<compile_context>
chip_gen: v6e
topology: v6e:2x2x1
jax: 0.10.0
libtpu: 0.0.40
codegen_flags: <defaults>
</compile_context>

<pallas_src>
import functools

import jax
import jax.numpy as jnp
from jax import lax
from jax.experimental import pallas as pl
from jax.experimental.pallas import tpu as pltpu


def _conv_stats_kernel(p_ref, w_ref, fold_ref, slab_ref, stats_ref):
    # p_ref    : (TR, Wo*K*K*Cin)    bf16 im2col rows (Wo pixels folded per row)
    # w_ref    : (Wo*K*K*Cin, Wo*Co) bf16 block-diagonal conv weight
    # fold_ref : (Wo*Co, Co)         f32 0/1 matrix folding lanes -> channels
    # slab_ref : (TR, Wo*Co)         f32 conv output, lane-dense
    # stats_ref: (1, 2, Co)          f32 per-tile [sum; sumsq] per channel
    acc = jnp.dot(p_ref[...], w_ref[...], preferred_element_type=jnp.float32)
    slab_ref[...] = acc
    col_sum = jnp.sum(acc, axis=0, keepdims=True)              # (1, Wo*Co)
    col_sq = jnp.sum(acc * acc, axis=0, keepdims=True)         # (1, Wo*Co)
    ch = jnp.dot(jnp.concatenate([col_sum, col_sq], axis=0), fold_ref[...],
                 preferred_element_type=jnp.float32)           # (2, Co)
    stats_ref[...] = ch[None, :, :]


def _bn_relu_kernel(x_ref, stats_ref, gamma_ref, beta_ref, o_ref, *,
                    inv_m, eps, w_out):
    # x_ref    : (TR, Wo*Co) f32 conv slab tile
    # stats_ref: (T, 2, Co)  f32 per-tile partial sums (full array)
    # gamma/beta: (1, Co)    f32
    st = jnp.sum(stats_ref[...], axis=0)                       # (2, Co)
    mean = st[0:1, :] * inv_m
    ex2 = st[1:2, :] * inv_m
    var = ex2 - mean * mean                                    # biased variance
    scale = gamma_ref[...] * lax.rsqrt(var + eps)              # (1, Co)
    shift = beta_ref[...] - mean * scale                       # (1, Co)
    scale_row = jnp.tile(scale, (1, w_out))                    # (1, Wo*Co)
    shift_row = jnp.tile(shift, (1, w_out))
    y = jnp.maximum(x_ref[...] * scale_row + shift_row, 0.0)   # fused FMA + ReLU
    o_ref[...] = y.astype(o_ref.dtype)


def basic_conv2d(x_nchw, w_oihw, gamma, beta, *, eps=1e-3, padding=1):
    """Conv2d(stride=1, no bias) -> BatchNorm2d(training-mode batch stats) -> ReLU.

    x_nchw: (N, Cin, H, W) f32, w_oihw: (Cout, Cin, K, K), gamma/beta: (Cout,).
    Returns NCHW f32 output (same layout as the PyTorch module)."""
    N, Cin, H, W = x_nchw.shape
    Cout, Cin2, KH, KW = w_oihw.shape
    assert Cin == Cin2 and KH == KW, "square kernel, matching channels assumed"
    K = KH
    Ho = H + 2 * padding - K + 1
    Wo = W + 2 * padding - K + 1
    KKC = K * K * Cin
    NH = N * Ho
    WC = Wo * Cout
    M = N * Ho * Wo

    # ---- XLA wrapper glue: im2col + parameter repacking ---------------------
    # TODO(synk): at production Inception shapes, move halo/im2col into the kernel
    # (BlockSpec index_map over spatial tiles) to avoid the K*K-inflated patch
    # tensor in HBM; the block-diagonal weight trick only pays while Wo*Cout is small.
    x = jnp.transpose(x_nchw, (0, 2, 3, 1))                                   # NHWC
    xp = jnp.pad(x, ((0, 0), (padding, padding), (padding, padding), (0, 0)))
    cols = [xp[:, kh:kh + Ho, kw:kw + Wo, :] for kh in range(K) for kw in range(K)]
    patches = jnp.concatenate(cols, axis=-1)                                  # (N,Ho,Wo,KKC)
    patches2 = patches.reshape(NH, Wo * KKC).astype(jnp.bfloat16)             # (NH, Wo*KKC)

    wm = jnp.transpose(w_oihw, (2, 3, 1, 0)).reshape(KKC, Cout).astype(jnp.float32)
    wbd = jnp.kron(jnp.eye(Wo, dtype=jnp.float32), wm).astype(jnp.bfloat16)   # (Wo*KKC, WC)
    fold = (jnp.arange(WC)[:, None] % Cout ==
            jnp.arange(Cout)[None, :]).astype(jnp.float32)                    # (WC, Cout)
    gamma2 = gamma.reshape(1, Cout).astype(jnp.float32)
    beta2 = beta.reshape(1, Cout).astype(jnp.float32)

    # Row tiling over the (NH, WC) slab; TR sublane-aligned rows per grid step.
    TR = 8 if NH % 8 == 0 else NH
    T = NH // TR

    # ---- Kernel 1: im2col GEMM (lane-dense slab) + per-tile BN partials ------
    slab, stats = pl.pallas_call(
        _conv_stats_kernel,
        out_shape=(jax.ShapeDtypeStruct((NH, WC), jnp.float32),
                   jax.ShapeDtypeStruct((T, 2, Cout), jnp.float32)),
        grid=(T,),
        in_specs=[
            pl.BlockSpec((TR, Wo * KKC), lambda i: (i, 0)),    # im2col rows
            pl.BlockSpec((Wo * KKC, WC), lambda i: (0, 0)),    # block-diag weight
            pl.BlockSpec((WC, Cout), lambda i: (0, 0)),        # lane->channel fold
        ],
        out_specs=(
            pl.BlockSpec((TR, WC), lambda i: (i, 0)),          # conv slab tile
            pl.BlockSpec((1, 2, Cout), lambda i: (i, 0, 0)),   # per-tile stats
        ),
        compiler_params=pltpu.CompilerParams(
            dimension_semantics=("parallel",)),
    )(patches2, wbd, fold)

    # ---- Kernel 2: fused scale/shift BatchNorm + ReLU -------------------------
    bn_kernel = functools.partial(_bn_relu_kernel, inv_m=1.0 / M, eps=eps, w_out=Wo)
    y_slab = pl.pallas_call(
        bn_kernel,
        out_shape=jax.ShapeDtypeStruct((NH, WC), jnp.float32),
        grid=(T,),
        in_specs=[
            pl.BlockSpec((TR, WC), lambda i: (i, 0)),          # conv slab tile
            pl.BlockSpec((T, 2, Cout), lambda i: (0, 0, 0)),   # all partials
            pl.BlockSpec((1, Cout), lambda i: (0, 0)),         # gamma
            pl.BlockSpec((1, Cout), lambda i: (0, 0)),         # beta
        ],
        out_specs=pl.BlockSpec((TR, WC), lambda i: (i, 0)),
        compiler_params=pltpu.CompilerParams(
            dimension_semantics=("parallel",)),
    )(slab, stats, gamma2, beta2)

    y = y_slab.reshape(N, Ho, Wo, Cout)        # slab rows = (n*Ho+h), lanes = (w, cout)
    return jnp.transpose(y, (0, 3, 1, 2))      # back to NCHW


def reference_nchw(x, w, gamma, beta, eps=1e-3, padding=1):
    y = lax.conv_general_dilated(
        x, w, window_strides=(1, 1),
        padding=((padding, padding), (padding, padding)),
        dimension_numbers=("NCHW", "OIHW", "NCHW"))
    mean = jnp.mean(y, axis=(0, 2, 3), keepdims=True)
    var = jnp.mean((y - mean) ** 2, axis=(0, 2, 3), keepdims=True)
    y = (y - mean) * lax.rsqrt(var + eps) * gamma.reshape(1, -1, 1, 1) \
        + beta.reshape(1, -1, 1, 1)
    return jnp.maximum(y, 0.0)


if __name__ == "__main__":
    # BasicConv2d(in_channels=4, out_channels=8, kernel_size=3, padding=1)
    N, Cin, H, W = 2, 4, 16, 16
    Cout, K = 8, 3

    key = jax.random.PRNGKey(0)
    kx, kw, kg, kb = jax.random.split(key, 4)

    x = jax.random.normal(kx, (N, Cin, H, W), dtype=jnp.float32)
    w = jax.random.normal(kw, (Cout, Cin, K, K), dtype=jnp.float32) \
        * ((Cin * K * K) ** -0.5)
    gamma = 1.0 + 0.1 * jax.random.normal(kg, (Cout,), dtype=jnp.float32)
    beta = 0.1 * jax.random.normal(kb, (Cout,), dtype=jnp.float32)

    out = basic_conv2d(x, w, gamma, beta, eps=1e-3, padding=1)
    out = jax.block_until_ready(out)

    ref = reference_nchw(x, w, gamma, beta, eps=1e-3, padding=1)
    assert out.shape == ref.shape == (N, Cout, H, W)
    err = float(jnp.max(jnp.abs(out - ref)))
    # bf16 MXU operands vs f32 reference -> loosened tolerance (BN math is f32).
    assert err < 5e-2, f"mismatch vs reference: max abs err = {err}"
    print("KERNEL_OK")
</pallas_src>

<mosaic_0001>
module attributes {stable_mosaic.version = 11 : i64} {
  func.func @_conv_stats_kernel(%arg0: i32, %arg1: memref<8x576xbf16, #tpu.memory_space<vmem>>, %arg2: memref<576x128xbf16, #tpu.memory_space<vmem>>, %arg3: memref<128x8xf32, #tpu.memory_space<vmem>>, %arg4: memref<8x128xf32, #tpu.memory_space<vmem>>, %arg5: memref<1x2x8xf32, #tpu.memory_space<vmem>>) attributes {dimension_semantics = [#tpu.dimension_semantics<parallel>], iteration_bounds = array<i64: 4>, scalar_prefetch = 0 : i64, scratch_operands = 0 : i64, tpu.core_type = #tpu.core_type<tc>, window_params = [{transform_indices = @transform_0, window_bounds = array<i64: 8, 576>}, {pipeline_mode = #tpu.pipeline_mode<synchronous>, transform_indices = @transform_1, window_bounds = array<i64: 576, 128>}, {pipeline_mode = #tpu.pipeline_mode<synchronous>, transform_indices = @transform_2, window_bounds = array<i64: 128, 8>}, {transform_indices = @transform_3, window_bounds = array<i64: 8, 128>}, {transform_indices = @transform_4, window_bounds = array<i64: 1, 2, 8>}]} {
    %c0 = arith.constant 0 : index
    %c0_0 = arith.constant 0 : index
    %0 = vector.load %arg1[%c0, %c0_0] : memref<8x576xbf16, #tpu.memory_space<vmem>>, vector<8x576xbf16>
    %c0_1 = arith.constant 0 : index
    %c0_2 = arith.constant 0 : index
    %1 = vector.load %arg2[%c0_1, %c0_2] : memref<576x128xbf16, #tpu.memory_space<vmem>>, vector<576x128xbf16>
    %cst = arith.constant dense<0.000000e+00> : vector<8x128xf32>
    %2 = tpu.matmul %0, %1, %cst {dimension_numbers = #tpu.dot_dimension_numbers<[1], [0], [0], [1], [0, 0, 1, 1], [], []>} : vector<8x576xbf16>, vector<576x128xbf16>, vector<8x128xf32> -> vector<8x128xf32>
    %c0_3 = arith.constant 0 : index
    %c0_4 = arith.constant 0 : index
    %3 = vector.load %arg4[%c0_3, %c0_4] : memref<8x128xf32, #tpu.memory_space<vmem>>, vector<8x128xf32>
    tpu.vector_store %arg4[%c0_3, %c0_4], %2 {strides = array<i32>} : memref<8x128xf32, #tpu.memory_space<vmem>>, vector<8x128xf32>,
    %cst_5 = arith.constant dense<0.000000e+00> : vector<128xf32>
    %4 = vector.multi_reduction <add>, %2, %cst_5 [0] : vector<8x128xf32> to vector<128xf32>
    %5 = vector.shape_cast %4 : vector<128xf32> to vector<1x128xf32>
    %6 = arith.mulf %2, %2 : vector<8x128xf32>
    %cst_6 = arith.constant dense<0.000000e+00> : vector<128xf32>
    %7 = vector.multi_reduction <add>, %6, %cst_6 [0] : vector<8x128xf32> to vector<128xf32>
    %8 = vector.shape_cast %7 : vector<128xf32> to vector<1x128xf32>
    %9 = tpu.concatenate %5, %8 in 0 : vector<1x128xf32>, vector<1x128xf32> -> vector<2x128xf32>
    %c0_7 = arith.constant 0 : index
    %c0_8 = arith.constant 0 : index
    %10 = vector.load %arg3[%c0_7, %c0_8] : memref<128x8xf32, #tpu.memory_space<vmem>>, vector<128x8xf32>
    %cst_9 = arith.constant dense<0.000000e+00> : vector<2x8xf32>
    %11 = tpu.matmul %9, %10, %cst_9 {dimension_numbers = #tpu.dot_dimension_numbers<[1], [0], [0], [1], [0, 0, 1, 1], [], []>} : vector<2x128xf32>, vector<128x8xf32>, vector<2x8xf32> -> vector<2x8xf32>
    %12 = vector.shape_cast %11 : vector<2x8xf32> to vector<1x2x8xf32>
    %c0_10 = arith.constant 0 : index
    %c0_11 = arith.constant 0 : index
    %c0_12 = arith.constant 0 : index
    %13 = vector.load %arg5[%c0_10, %c0_11, %c0_12] : memref<1x2x8xf32, #tpu.memory_space<vmem>>, vector<1x2x8xf32>
    tpu.vector_store %arg5[%c0_10, %c0_11, %c0_12], %12 {strides = array<i32>} : memref<1x2x8xf32, #tpu.memory_space<vmem>>, vector<1x2x8xf32>,
    return
  }
  func.func @transform_0(%arg0: i32) -> (i32, i32) {
    %c0_i32 = arith.constant 0 : i32
    %c0_i32_0 = arith.constant 0 : i32
    return %arg0, %c0_i32 : i32, i32
  }
  func.func @transform_1(%arg0: i32) -> (i32, i32) {
    %c0_i32 = arith.constant 0 : i32
    %c0_i32_0 = arith.constant 0 : i32
    %c0_i32_1 = arith.constant 0 : i32
    return %c0_i32, %c0_i32_0 : i32, i32
  }
  func.func @transform_2(%arg0: i32) -> (i32, i32) {
    %c0_i32 = arith.constant 0 : i32
    %c0_i32_0 = arith.constant 0 : i32
    %c0_i32_1 = arith.constant 0 : i32
    return %c0_i32, %c0_i32_0 : i32, i32
  }
  func.func @transform_3(%arg0: i32) -> (i32, i32) {
    %c0_i32 = arith.constant 0 : i32
    %c0_i32_0 = arith.constant 0 : i32
    return %arg0, %c0_i32 : i32, i32
  }
  func.func @transform_4(%arg0: i32) -> (i32, i32, i32) {
    %c0_i32 = arith.constant 0 : i32
    %c0_i32_0 = arith.constant 0 : i32
    %c0_i32_1 = arith.constant 0 : i32
    return %arg0, %c0_i32, %c0_i32_0 : i32, i32, i32
  }
}

</mosaic_0001>

<llo_original>
// kernel: tpu_custom_call.1
$region0: #{tpu_custom_call.1}
  #allocation0 [shape = 'u32[]', space=smem, size = 0x4, offset = 0x4, fixed_abs, tag = 'smem constant byte address 0x4 - core index']
  #allocation1 [shape = 'u32[144,128]{1,0:T(1,128)}', space=vmem, size = 0x12000, scoped, tag = 'internal scratch']
  %s0 = inlined_call_operand.vmem [shape: bf16[32,576], index: 0, kind: input, shape index: {}]
  %s1 = inlined_call_operand.hbm [shape: bf16[576,128], index: 1, kind: input, shape index: {}]
  %s2 = inlined_call_operand.vmem [shape: f32[128,8], index: 2, kind: input, shape index: {}]
  %s3 = inlined_call_operand.hbm [shape: f32[32,128], index: 3, kind: output, shape index: {0}]
  %s4 = inlined_call_operand.hbm [shape: f32[4,2,8], index: 4, kind: output, shape index: {1}]
  %5 = xla_tuple %s3, %s4
  %s6 = sld [smem:[#allocation0]]
  $region57: #{tpu_custom_call.1} parent=0
    _
  %s8 = ssub.s32 1, %s6
  %s9 = scalar_select 0, %s8, %s6
  $region1: #{tpu_custom_call.1} parent=0
    #allocation2 [shape = 'u8[147456]{0}', space=vmem, size = 0x24000, scoped, tag = 'input window, operand 1, single buffered']
    #allocation3 [shape = 's32[2]{0}', space=sflag, size = 0x8, scoped, tag = 'scoped memory for tpu_custom_call.1']
    #allocation4 [shape = 's32[2]{0}', space=sflag, size = 0x8, scoped, tag = 'scoped memory for tpu_custom_call.1']
    #allocation5 [shape = 'u8[8192]{0}', space=vmem, size = 0x2000, scoped, tag = 'output window, operand 0']
    #allocation6 [shape = 'u8[2048]{0}', space=vmem, size = 0x800, scoped, tag = 'output window, operand 1']
    #allocation7 [shape = 's32[2]{0}', space=sflag, size = 0x8, scoped, tag = 'scoped memory for tpu_custom_call.1']
    %10 = vsyncpa [#allocation3], 0
    %11 = vsyncpa [#allocation4], 0
    %s12 = scalar_lea.sflag [#allocation4], 1
    %13 = vsyncpa %s12, 0
    %14 = vsyncpa [#allocation7], 0
    %s15 = scalar_lea.sflag [#allocation7], 1
    %16 = vsyncpa %s15, 0
    loop: start=0, step=1, limit=6
    $region2: #{tpu_custom_call.1} parent=1 // loop_pre_header
      _
    $region3: #{tpu_custom_call.1} parent=1 // loop_header
      %s18 = sphi 0, %s22
      %p19 = scmp.ge.s32.totalorder %s18, 6
      %s28 = sphi 0, %s30
      %s31 = sphi 0, %s28
      %s32 = sphi 0, %s31
      %s48 = sphi 0, %s32
      %s52 = sphi 0, %s52
      %s54 = sphi 0, %s52
      %s55 = sphi 0, %s54
      %s69 = sphi 0, %s55
      %s73 = sphi 0, %s73
      %s75 = sphi 0, %s73
      %s76 = sphi 0, %s75
      %s90 = sphi 0, %s76
      %s96 = sphi 0, %s98
      %s99 = sphi 0, %s96
      %s100 = sphi 0, %s99
      %s116 = sphi 0, %s100
      %s122 = sphi 0, %s124
      %s125 = sphi 0, %s122
      %s126 = sphi 0, %s125
      %s142 = sphi 0, %s126
    $region4: #{tpu_custom_call.1} parent=1 // loop_header_branch
      %21 = sbr.rel (%p19) target = $region8
    $region5: #{tpu_custom_call.1} parent=1 // loop_body
      %s23 = ssub.s32 %s18, 1
      %s24 = ssub.s32 %s18, 2
      %s25 = sadd.s32 %s18, 1
      %s26 = ssub.s32 %s18, %s25
      %p27 = scmp.eq.s32.totalorder %s26, 0
      %s29 = sadd.s32 %s28, 1
      %s30 = scalar_select %p27, %s28, %s29
      %p33 = pneg %p27
      %p34 = scmp.eq.s32.totalorder %s18, 3
      %p35 = por %p33, %p34
      %p36 = scmp.ne.s32.totalorder %s28, %s31
      %p37 = scmp.eq.s32.totalorder %s18, 0
      %p38 = por %p36, %p37
      %p39 = scmp.ne.s32.totalorder %s28, %s31
      %p40 = scmp.eq.s32.totalorder %s23, 3
      %p41 = por %p39, %p40
      %p42 = scmp.ne.s32.totalorder %s31, %s32
      %p43 = scmp.eq.s32.totalorder %s23, 0
      %p44 = por %p42, %p43
      %p45 = scmp.ne.s32.totalorder %s31, %s32
      %p46 = scmp.eq.s32.totalorder %s24, 3
      %p47 = por %p45, %p46
      %p49 = scmp.ne.s32.totalorder %s32, %s48
      %p50 = scmp.eq.s32.totalorder %s24, 0
      %p51 = por %p49, %p50
      %s53 = sadd.s32 %s52, 1
      %p56 = scmp.eq.s32.totalorder %s18, 3
      %p57 = scmp.ne.s32.totalorder %s52, %s54
      %p58 = scmp.eq.s32.totalorder %s18, 0
      %p59 = por %p57, %p58
      %p60 = scmp.ne.s32.totalorder %s52, %s54
      %p61 = scmp.eq.s32.totalorder %s23, 3
      %p62 = por %p60, %p61
      %p63 = scmp.ne.s32.totalorder %s54, %s55
      %p64 = scmp.eq.s32.totalorder %s23, 0
      %p65 = por %p63, %p64
      %p66 = scmp.ne.s32.totalorder %s54, %s55
      %p67 = scmp.eq.s32.totalorder %s24, 3
      %p68 = por %p66, %p67
      %p70 = scmp.ne.s32.totalorder %s55, %s69
      %p71 = scmp.eq.s32.totalorder %s24, 0
      %p72 = por %p70, %p71
      %s74 = sadd.s32 %s73, 1
      %p77 = scmp.eq.s32.totalorder %s18, 3
      %p78 = scmp.ne.s32.totalorder %s73, %s75
      %p79 = scmp.eq.s32.totalorder %s18, 0
      %p80 = por %p78, %p79
      %p81 = scmp.ne.s32.totalorder %s73, %s75
      %p82 = scmp.eq.s32.totalorder %s23, 3
      %p83 = por %p81, %p82
      %p84 = scmp.ne.s32.totalorder %s75, %s76
      %p85 = scmp.eq.s32.totalorder %s23, 0
      %p86 = por %p84, %p85
      %p87 = scmp.ne.s32.totalorder %s75, %s76
      %p88 = scmp.eq.s32.totalorder %s24, 3
      %p89 = por %p87, %p88
      %p91 = scmp.ne.s32.totalorder %s76, %s90
      %p92 = scmp.eq.s32.totalorder %s24, 0
      %p93 = por %p91, %p92
      %s94 = ssub.s32 %s18, %s25
      %p95 = scmp.eq.s32.totalorder %s94, 0
      %s97 = sadd.s32 %s96, 1
      %s98 = scalar_select %p95, %s96, %s97
      %p101 = pneg %p95
      %p102 = scmp.eq.s32.totalorder %s18, 3
      %p103 = por %p101, %p102
      %p104 = scmp.ne.s32.totalorder %s96, %s99
      %p105 = scmp.eq.s32.totalorder %s18, 0
      %p106 = por %p104, %p105
      %p107 = scmp.ne.s32.totalorder %s96, %s99
      %p108 = scmp.eq.s32.totalorder %s23, 3
      %p109 = por %p107, %p108
      %p110 = scmp.ne.s32.totalorder %s99, %s100
      %p111 = scmp.eq.s32.totalorder %s23, 0
      %p112 = por %p110, %p111
      %p113 = scmp.ne.s32.totalorder %s99, %s100
      %p114 = scmp.eq.s32.totalorder %s24, 3
      %p115 = por %p113, %p114
      %p117 = scmp.ne.s32.totalorder %s100, %s116
      %p118 = scmp.eq.s32.totalorder %s24, 0
      %p119 = por %p117, %p118
      %s120 = ssub.s32 %s18, %s25
      %p121 = scmp.eq.s32.totalorder %s120, 0
      %s123 = sadd.s32 %s122, 1
      %s124 = scalar_select %p121, %s122, %s123
      %p127 = pneg %p121
      %p128 = scmp.eq.s32.totalorder %s18, 3
      %p129 = por %p127, %p128
      %p130 = scmp.ne.s32.totalorder %s122, %s125
      %p131 = scmp.eq.s32.totalorder %s18, 0
      %p132 = por %p130, %p131
      %p133 = scmp.ne.s32.totalorder %s122, %s125
      %p134 = scmp.eq.s32.totalorder %s23, 3
      %p135 = por %p133, %p134
      %p136 = scmp.ne.s32.totalorder %s125, %s126
      %p137 = scmp.eq.s32.totalorder %s23, 0
      %p138 = por %p136, %p137
      %p139 = scmp.ne.s32.totalorder %s125, %s126
      %p140 = scmp.eq.s32.totalorder %s24, 3
      %p141 = por %p139, %p140
      %p143 = scmp.ne.s32.totalorder %s126, %s142
      %p144 = scmp.eq.s32.totalorder %s24, 0
      %p145 = por %p143, %p144
      %p146 = scmp.le.s32.totalorder 1, %s18
      %p147 = scmp.lt.s32.totalorder %s18, 5
      %p148 = pnand %p146, %p147
      %p149 = pneg %p148
      // Predicated region
      $region9: #{tpu_custom_call.1} parent=5 // pred_check
        _
      $region10: #{tpu_custom_call.1} parent=5 // pred_check_branch
        %151 = sbr.rel (%p148) target = $region12
      $region11: #{tpu_custom_call.1} parent=5 // pred_region
        %s152 = ssub.s32 %s18, 1
        // Predicated region
        $region13: #{tpu_custom_call.1} parent=11 // pred_check
          %p153 = pneg %p65
        $region14: #{tpu_custom_call.1} parent=11 // pred_check_branch
          %155 = sbr.rel (%p153) target = $region16
        $region15: #{tpu_custom_call.1} parent=11 // pred_region
          %s157 = ssub.s32 4608, 4608
          %158 = vsyncadd [#allocation3], %s157
          %s159 = sshll.u32 [#allocation2], 4
          %s160 = int_to_ptr.vmem [resolvable:$true] %s159
          %165 = dma.hbm_to_vmem [thread:$0]  %s1, 4608, %s160, [#allocation3], 64, 64, 4
        $region16: #{tpu_custom_call.1} parent=11 // pred_fallthru
          _
        // Predicated region
        $region17: #{tpu_custom_call.1} parent=11 // pred_check
          %p166 = pneg %p86
        $region18: #{tpu_custom_call.1} parent=11 // pred_check_branch
          %168 = sbr.rel (%p166) target = $region20
        $region19: #{tpu_custom_call.1} parent=11 // pred_region
          _
        $region20: #{tpu_custom_call.1} parent=11 // pred_fallthru
          _
      $region12: #{tpu_custom_call.1} parent=5 // pred_fallthru
        _
      %p169 = scmp.lt.s32.totalorder %s18, 4
      // Predicated region
      $region21: #{tpu_custom_call.1} parent=5 // pred_check
        %p170 = pneg %p169
      $region22: #{tpu_custom_call.1} parent=5 // pred_check_branch
        %172 = sbr.rel (%p170) target = $region24
      $region23: #{tpu_custom_call.1} parent=5 // pred_region
        // Predicated region
        $region25: #{tpu_custom_call.1} parent=23 // pred_check
          %p173 = pneg %p38
        $region26: #{tpu_custom_call.1} parent=23 // pred_check_branch
          %175 = sbr.rel (%p173) target = $region28
        $region27: #{tpu_custom_call.1} parent=23 // pred_region
          %p176 = scmp.lt.s32.totalorder %s18, 3
          %s177 = scalar_select %p176, %s18, 3
          %s178 = smul.addr %s177, 5
          %s179 = smul.addr %s178, 4
          %s180 = scalar_lea.vmem %s0, %s179
        $region28: #{tpu_custom_call.1} parent=23 // pred_fallthru
          _
      $region24: #{tpu_custom_call.1} parent=5 // pred_fallthru
        _
      %p181 = scmp.le.s32.totalorder 1, %s18
      %p182 = scmp.lt.s32.totalorder %s18, 5
      %p183 = pnand %p181, %p182
      %p184 = pneg %p183
      // Predicated region
      $region29: #{tpu_custom_call.1} parent=5 // pred_check
        _
      $region30: #{tpu_custom_call.1} parent=5 // pred_check_branch
        %186 = sbr.rel (%p183) target = $region32
      $region31: #{tpu_custom_call.1} parent=5 // pred_region
        %s187 = ssub.s32 %s18, 1
        // Predicated region
        $region33: #{tpu_custom_call.1} parent=31 // pred_check
          %p188 = pneg %p65
        $region34: #{tpu_custom_call.1} parent=31 // pred_check_branch
          %190 = sbr.rel (%p188) target = $region36
        $region35: #{tpu_custom_call.1} parent=31 // pred_region
          %191 = dma.done [#allocation3], 4608
        $region36: #{tpu_custom_call.1} parent=31 // pred_fallthru
          _
        %p192 = scmp.lt.s32.totalorder %s23, 3
        %s193 = scalar_select %p192, %s23, 3
        %s194 = smul.addr %s193, 5
        %s195 = smul.addr %s194, 4
        %s196 = scalar_lea.vmem %s0, %s195
        %p197 = pneg %p44
        %p198 = pneg %p41
        %p199 = pneg %p65
        %p200 = pneg %p62
        %p201 = pneg %p86
        %p202 = pneg %p83
        %p203 = pneg %p112
        %p204 = pneg %p109
        %s205 = sand.u32 %s99, 1
        %s206 = scalar_lea.sflag [#allocation4], %s205
        %s207 = sand.u32 %s99, 1
        %s208 = smul.addr %s207, 8
        %s209 = scalar_lea.vmem [#allocation5], %s208
        %p210 = pneg %p138
        %p211 = pneg %p135
        %s212 = sand.u32 %s125, 1
        %s213 = scalar_lea.sflag [#allocation7], %s212
        %s214 = sand.u32 %s125, 1
        %s215 = smul.addr %s214, 2
        %s216 = scalar_lea.vmem [#allocation6], %s215
        %p217 = scmp.lt.s32.totalorder %s23, 3
        %s218 = scalar_select %p217, %s23, 3
        %s219 = smul.addr %s218, 5
        %s220 = smul.addr %s219, 4
        %s221 = scalar_lea.vmem %s0, %s220
        %v223 = vld [vmem:[%s221] sm:$0xff]
        %v224 = vld [vmem:[%s221 + $0x8] sm:$0xff]
        %v225 = vld [vmem:[%s221 + $0x10] sm:$0xf]
        %v226 = vld [vmem:[#allocation2] sm:$0xf]
        %v227 = vld [vmem:[#allocation2 + $0x4] sm:$0xf]
        %v228 = vld [vmem:[#allocation2 + $0x8] sm:$0xf]
        %v229 = vld [vmem:[#allocation2 + $0xc] sm:$0xf]
        %v230 = vld [vmem:[#allocation2 + $0x10] sm:$0xf]
        %v231 = vld [vmem:[#allocation2 + $0x14] sm:$0xf]
        %v232 = vld [vmem:[#allocation2 + $0x18] sm:$0xf]
        %v233 = vld [vmem:[#allocation2 + $0x1c] sm:$0xf]
        %v234 = vld [vmem:[#allocation2 + $0x20] sm:$0xf]
        %v235 = vld [vmem:[#allocation2 + $0x24] sm:$0xf]
        %v236 = vld [vmem:[#allocation2 + $0x28] sm:$0xf]
        %v237 = vld [vmem:[#allocation2 + $0x2c] sm:$0xf]
        %v238 = vld [vmem:[#allocation2 + $0x30] sm:$0xf]
        %v239 = vld [vmem:[#allocation2 + $0x34] sm:$0xf]
        %v240 = vld [vmem:[#allocation2 + $0x38] sm:$0xf]
        %v241 = vld [vmem:[#allocation2 + $0x3c] sm:$0xf]
        %v242 = vld [vmem:[#allocation2 + $0x40] sm:$0xf]
        %v243 = vld [vmem:[#allocation2 + $0x44] sm:$0xf]
        %v244 = vld [vmem:[#allocation2 + $0x48] sm:$0xf]
        %v245 = vld [vmem:[#allocation2 + $0x4c] sm:$0xf]
        %v246 = vld [vmem:[#allocation2 + $0x50] sm:$0xf]
        %v247 = vld [vmem:[#allocation2 + $0x54] sm:$0xf]
        %v248 = vld [vmem:[#allocation2 + $0x58] sm:$0xf]
        %v249 = vld [vmem:[#allocation2 + $0x5c] sm:$0xf]
        %v250 = vld [vmem:[#allocation2 + $0x60] sm:$0xf]
        %v251 = vld [vmem:[#allocation2 + $0x64] sm:$0xf]
        %v252 = vld [vmem:[#allocation2 + $0x68] sm:$0xf]
        %v253 = vld [vmem:[#allocation2 + $0x6c] sm:$0xf]
        %v254 = vld [vmem:[#allocation2 + $0x70] sm:$0xf]
        %v255 = vld [vmem:[#allocation2 + $0x74] sm:$0xf]
        %v256 = vld [vmem:[#allocation2 + $0x78] sm:$0xf]
        %v257 = vld [vmem:[#allocation2 + $0x7c] sm:$0xf]
        %v258 = vld [vmem:[#allocation2 + $0x80] sm:$0xf]
        %v259 = vld [vmem:[#allocation2 + $0x84] sm:$0xf]
        %v260 = vld [vmem:[#allocation2 + $0x88] sm:$0xf]
        %v261 = vld [vmem:[#allocation2 + $0x8c] sm:$0xf]
        %v262 = vld [vmem:[#allocation2 + $0x90] sm:$0xf]
        %v263 = vld [vmem:[#allocation2 + $0x94] sm:$0xf]
        %v264 = vld [vmem:[#allocation2 + $0x98] sm:$0xf]
        %v265 = vld [vmem:[#allocation2 + $0x9c] sm:$0xf]
        %v266 = vld [vmem:[#allocation2 + $0xa0] sm:$0xf]
        %v267 = vld [vmem:[#allocation2 + $0xa4] sm:$0xf]
        %v268 = vld [vmem:[#allocation2 + $0xa8] sm:$0xf]
        %v269 = vld [vmem:[#allocation2 + $0xac] sm:$0xf]
        %v270 = vld [vmem:[#allocation2 + $0xb0] sm:$0xf]
        %v271 = vld [vmem:[#allocation2 + $0xb4] sm:$0xf]
        %v272 = vld [vmem:[#allocation2 + $0xb8] sm:$0xf]
        %v273 = vld [vmem:[#allocation2 + $0xbc] sm:$0xf]
        %v274 = vld [vmem:[#allocation2 + $0xc0] sm:$0xf]
        %v275 = vld [vmem:[#allocation2 + $0xc4] sm:$0xf]
        %v276 = vld [vmem:[#allocation2 + $0xc8] sm:$0xf]
        %v277 = vld [vmem:[#allocation2 + $0xcc] sm:$0xf]
        %v278 = vld [vmem:[#allocation2 + $0xd0] sm:$0xf]
        %v279 = vld [vmem:[#allocation2 + $0xd4] sm:$0xf]
        %v280 = vld [vmem:[#allocation2 + $0xd8] sm:$0xf]
        %v281 = vld [vmem:[#allocation2 + $0xdc] sm:$0xf]
        %v282 = vld [vmem:[#allocation2 + $0xe0] sm:$0xf]
        %v283 = vld [vmem:[#allocation2 + $0xe4] sm:$0xf]
        %v284 = vld [vmem:[#allocation2 + $0xe8] sm:$0xf]
        %v285 = vld [vmem:[#allocation2 + $0xec] sm:$0xf]
        %v286 = vld [vmem:[#allocation2 + $0xf0] sm:$0xf]
        %v287 = vld [vmem:[#allocation2 + $0xf4] sm:$0xf]
        %v288 = vld [vmem:[#allocation2 + $0xf8] sm:$0xf]
        %v289 = vld [vmem:[#allocation2 + $0xfc] sm:$0xf]
        %v290 = vld [vmem:[#allocation2 + $0x100] sm:$0xf]
        %v291 = vld [vmem:[#allocation2 + $0x104] sm:$0xf]
        %v292 = vld [vmem:[#allocation2 + $0x108] sm:$0xf]
        %v293 = vld [vmem:[#allocation2 + $0x10c] sm:$0xf]
        %v294 = vld [vmem:[#allocation2 + $0x110] sm:$0xf]
        %v295 = vld [vmem:[#allocation2 + $0x114] sm:$0xf]
        %v296 = vld [vmem:[#allocation2 + $0x118] sm:$0xf]
        %v297 = vld [vmem:[#allocation2 + $0x11c] sm:$0xf]
        %v301 = vunpack.c.l.b16 %v223
        %v302 = vunpack.c.h.b16 %v223
        %v303 = vunpack.c.l.b16 %v224
        %v304 = vunpack.c.h.b16 %v224
        %v305 = vunpack.c.l.b16 %v225
        %v306 = vpack.c.b16 %v301, %v301
        %v307 = vpack.c.b16 %v302, %v302
        %v308 = vpack.c.b16 %v303, %v303
        %v309 = vpack.c.b16 %v304, %v304
        %v310 = vpack.c.b16 %v305, %v305
        %v387 = vunpack.c.l.b16 %v226
        %v388 = vunpack.c.l.b16 %v227
        %v389 = vunpack.c.l.b16 %v228
        %v390 = vunpack.c.l.b16 %v229
        %v391 = vunpack.c.l.b16 %v230
        %v392 = vunpack.c.l.b16 %v231
        %v393 = vunpack.c.l.b16 %v232
        %v394 = vunpack.c.l.b16 %v233
        %v395 = vunpack.c.l.b16 %v234
        %v396 = vunpack.c.l.b16 %v235
        %v397 = vunpack.c.l.b16 %v236
        %v398 = vunpack.c.l.b16 %v237
        %v399 = vunpack.c.l.b16 %v238
        %v400 = vunpack.c.l.b16 %v239
        %v401 = vunpack.c.l.b16 %v240
        %v402 = vunpack.c.l.b16 %v241
        %v403 = vunpack.c.l.b16 %v242
        %v404 = vunpack.c.l.b16 %v243
        %v405 = vunpack.c.l.b16 %v244
        %v406 = vunpack.c.l.b16 %v245
        %v407 = vunpack.c.l.b16 %v246
        %v408 = vunpack.c.l.b16 %v247
        %v409 = vunpack.c.l.b16 %v248
        %v410 = vunpack.c.l.b16 %v249
        %v411 = vunpack.c.l.b16 %v250
        %v412 = vunpack.c.l.b16 %v251
        %v413 = vunpack.c.l.b16 %v252
        %v414 = vunpack.c.l.b16 %v253
        %v415 = vunpack.c.l.b16 %v254
        %v416 = vunpack.c.l.b16 %v255
        %v417 = vunpack.c.l.b16 %v256
        %v418 = vunpack.c.l.b16 %v257
        %v419 = vunpack.c.l.b16 %v258
        %v420 = vunpack.c.l.b16 %v259
        %v421 = vunpack.c.l.b16 %v260
        %v422 = vunpack.c.l.b16 %v261
        %v423 = vunpack.c.l.b16 %v262
        %v424 = vunpack.c.l.b16 %v263
        %v425 = vunpack.c.l.b16 %v264
        %v426 = vunpack.c.l.b16 %v265
        %v427 = vunpack.c.l.b16 %v266
        %v428 = vunpack.c.l.b16 %v267
        %v429 = vunpack.c.l.b16 %v268
        %v430 = vunpack.c.l.b16 %v269
        %v431 = vunpack.c.l.b16 %v270
        %v432 = vunpack.c.l.b16 %v271
        %v433 = vunpack.c.l.b16 %v272
        %v434 = vunpack.c.l.b16 %v273
        %v435 = vunpack.c.l.b16 %v274
        %v436 = vunpack.c.l.b16 %v275
        %v437 = vunpack.c.l.b16 %v276
        %v438 = vunpack.c.l.b16 %v277
        %v439 = vunpack.c.l.b16 %v278
        %v440 = vunpack.c.l.b16 %v279
        %v441 = vunpack.c.l.b16 %v280
        %v442 = vunpack.c.l.b16 %v281
        %v443 = vunpack.c.l.b16 %v282
        %v444 = vunpack.c.l.b16 %v283
        %v445 = vunpack.c.l.b16 %v284
        %v446 = vunpack.c.l.b16 %v285
        %v447 = vunpack.c.l.b16 %v286
        %v448 = vunpack.c.l.b16 %v287
        %v449 = vunpack.c.l.b16 %v288
        %v450 = vunpack.c.l.b16 %v289
        %v451 = vunpack.c.l.b16 %v290
        %v452 = vunpack.c.l.b16 %v291
        %v453 = vunpack.c.l.b16 %v292
        %v454 = vunpack.c.l.b16 %v293
        %v455 = vunpack.c.l.b16 %v294
        %v456 = vunpack.c.l.b16 %v295
        %v457 = vunpack.c.l.b16 %v296
        %v458 = vunpack.c.l.b16 %v297
        %v459 = vpack.c.b16 %v388, %v387
        %v460 = vpack.c.b16 %v390, %v389
        %v461 = vpack.c.b16 %v392, %v391
        %v462 = vpack.c.b16 %v394, %v393
        %v463 = vpack.c.b16 %v396, %v395
        %v464 = vpack.c.b16 %v398, %v397
        %v465 = vpack.c.b16 %v400, %v399
        %v466 = vpack.c.b16 %v402, %v401
        %v467 = vpack.c.b16 %v404, %v403
        %v468 = vpack.c.b16 %v406, %v405
        %v469 = vpack.c.b16 %v408, %v407
        %v470 = vpack.c.b16 %v410, %v409
        %v471 = vpack.c.b16 %v412, %v411
        %v472 = vpack.c.b16 %v414, %v413
        %v473 = vpack.c.b16 %v416, %v415
        %v474 = vpack.c.b16 %v418, %v417
        %v475 = vpack.c.b16 %v420, %v419
        %v476 = vpack.c.b16 %v422, %v421
        %v477 = vpack.c.b16 %v424, %v423
        %v478 = vpack.c.b16 %v426, %v425
        %v479 = vpack.c.b16 %v428, %v427
        %v480 = vpack.c.b16 %v430, %v429
        %v481 = vpack.c.b16 %v432, %v431
        %v482 = vpack.c.b16 %v434, %v433
        %v483 = vpack.c.b16 %v436, %v435
        %v484 = vpack.c.b16 %v438, %v437
        %v485 = vpack.c.b16 %v440, %v439
        %v486 = vpack.c.b16 %v442, %v441
        %v487 = vpack.c.b16 %v444, %v443
        %v488 = vpack.c.b16 %v446, %v445
        %v489 = vpack.c.b16 %v448, %v447
        %v490 = vpack.c.b16 %v450, %v449
        %v491 = vpack.c.b16 %v452, %v451
        %v492 = vpack.c.b16 %v454, %v453
        %v493 = vpack.c.b16 %v456, %v455
        %v494 = vpack.c.b16 %v458, %v457
        %vm531 = vcmask 523264
        %v533 = vsel %vm531, %v310, 0
        %535 = vmatprep.subr.bf16.mxu0 0
        %536 = vmatpush1.bf16.msra.mxu0 %v466
        %537 = vmatprep.subr.bf16.mxu0 0
        %538 = vmatpush1.bf16.msra.mxu0 %v465
        %539 = vmatprep.subr.bf16.mxu0 0
        %540 = vmatpush1.bf16.msra.mxu0 %v464
        %541 = vmatprep.subr.bf16.mxu0 0
        %542 = vmatpush1.bf16.msra.mxu0 %v463
        %543 = vmatprep.subr.bf16.mxu0 0
        %544 = vmatpush1.bf16.msra.mxu0 %v462
        %545 = vmatprep.subr.bf16.mxu0 0
        %546 = vmatpush1.bf16.msra.mxu0 %v461
        %547 = vmatprep.subr.bf16.mxu0 0
        %548 = vmatpush1.bf16.msra.mxu0 %v460
        %549 = vmatprep.subr.bf16.mxu0 0
        %550 = vmatpush1.bf16.msra.mxu0 %v459
        %551 = vmatprep.subr.bf16.mxu0 0
        %552 = vmatpush2.bf16.msra.mxu0 %v474
        %553 = vmatprep.subr.bf16.mxu0 0
        %554 = vmatpush2.bf16.msra.mxu0 %v473
        %555 = vmatprep.subr.bf16.mxu0 0
        %556 = vmatpush2.bf16.msra.mxu0 %v472
        %557 = vmatprep.subr.bf16.mxu0 0
        %558 = vmatpush2.bf16.msra.mxu0 %v471
        %559 = vmatprep.subr.bf16.mxu0 0
        %560 = vmatpush2.bf16.msra.mxu0 %v470
        %561 = vmatprep.subr.bf16.mxu0 0
        %562 = vmatpush2.bf16.msra.mxu0 %v469
        %563 = vmatprep.subr.bf16.mxu0 0
        %564 = vmatpush2.bf16.msra.mxu0 %v468
        %565 = vmatprep.subr.bf16.mxu0 0
        %566 = vmatpush2.bf16.msra.mxu0 %v467
        %567 = vmatprep.mubr.bf16.mxu0 %v307
        %568 = vmatmul.mubr.bf16.gmra.mxu0 %v306
        %v569 = vpop.f32.mrf.mxu0
        %v570 = vadd.f32 0.0, %v569
        %v571 = vpop.f32.mrf.mxu0
        %v572 = vpop.f32.mrf.mxu0
        %v573 = vpop.f32.mrf.mxu0
        %574 = vdwg.mxu0
        %575 = vmatprep.subr.bf16.mxu0 0
        %576 = vmatpush1.bf16.msra.mxu0 %v482
        %577 = vmatprep.subr.bf16.mxu0 0
        %578 = vmatpush1.bf16.msra.mxu0 %v481
        %579 = vmatprep.subr.bf16.mxu0 0
        %580 = vmatpush1.bf16.msra.mxu0 %v480
        %581 = vmatprep.subr.bf16.mxu0 0
        %582 = vmatpush1.bf16.msra.mxu0 %v479
        %583 = vmatprep.subr.bf16.mxu0 0
        %584 = vmatpush1.bf16.msra.mxu0 %v478
        %585 = vmatprep.subr.bf16.mxu0 0
        %586 = vmatpush1.bf16.msra.mxu0 %v477
        %587 = vmatprep.subr.bf16.mxu0 0
        %588 = vmatpush1.bf16.msra.mxu0 %v476
        %589 = vmatprep.subr.bf16.mxu0 0
        %590 = vmatpush1.bf16.msra.mxu0 %v475
        %591 = vmatprep.subr.bf16.mxu0 0
        %592 = vmatpush2.bf16.msra.mxu0 %v490
        %593 = vmatprep.subr.bf16.mxu0 0
        %594 = vmatpush2.bf16.msra.mxu0 %v489
        %595 = vmatprep.subr.bf16.mxu0 0
        %596 = vmatpush2.bf16.msra.mxu0 %v488
        %597 = vmatprep.subr.bf16.mxu0 0
        %598 = vmatpush2.bf16.msra.mxu0 %v487
        %599 = vmatprep.subr.bf16.mxu0 0
        %600 = vmatpush2.bf16.msra.mxu0 %v486
        %601 = vmatprep.subr.bf16.mxu0 0
        %602 = vmatpush2.bf16.msra.mxu0 %v485
        %603 = vmatprep.subr.bf16.mxu0 0
        %604 = vmatpush2.bf16.msra.mxu0 %v484
        %605 = vmatprep.subr.bf16.mxu0 0
        %606 = vmatpush2.bf16.msra.mxu0 %v483
        %607 = vmatprep.mubr.bf16.mxu0 %v309
        %608 = vmatmul.mubr.bf16.gmra.mxu0 %v308
        %v609 = vpop.f32.mrf.mxu0
        %v610 = vadd.f32 %v570, %v609
        %v611 = vpop.f32.mrf.mxu0
        %v612 = vpop.f32.mrf.mxu0
        %v613 = vpop.f32.mrf.mxu0
        %614 = vdwg.mxu0
        %615 = vmatprep.subr.bf16.mxu0 0
        %616 = vmatpush1.bf16.msra.mxu0 0
        %617 = vmatprep.subr.bf16.mxu0 0
        %618 = vmatpush1.bf16.msra.mxu0 0
        %619 = vmatprep.subr.bf16.mxu0 0
        %620 = vmatpush1.bf16.msra.mxu0 0
        %621 = vmatprep.subr.bf16.mxu0 0
        %622 = vmatpush1.bf16.msra.mxu0 0
        %623 = vmatprep.subr.bf16.mxu0 0
        %624 = vmatpush1.bf16.msra.mxu0 %v494
        %625 = vmatprep.subr.bf16.mxu0 0
        %626 = vmatpush1.bf16.msra.mxu0 %v493
        %627 = vmatprep.subr.bf16.mxu0 0
        %628 = vmatpush1.bf16.msra.mxu0 %v492
        %629 = vmatprep.subr.bf16.mxu0 0
        %630 = vmatpush1.bf16.msra.mxu0 %v491
        %631 = vmatprep.subr.bf16.mxu0 0
        %632 = vmatpush2.bf16.msra.mxu0 0
        %633 = vmatprep.subr.bf16.mxu0 0
        %634 = vmatpush2.bf16.msra.mxu0 0
        %635 = vmatprep.subr.bf16.mxu0 0
        %636 = vmatpush2.bf16.msra.mxu0 0
        %637 = vmatprep.subr.bf16.mxu0 0
        %638 = vmatpush2.bf16.msra.mxu0 0
        %639 = vmatprep.subr.bf16.mxu0 0
        %640 = vmatpush2.bf16.msra.mxu0 0
        %641 = vmatprep.subr.bf16.mxu0 0
        %642 = vmatpush2.bf16.msra.mxu0 0
        %643 = vmatprep.subr.bf16.mxu0 0
        %644 = vmatpush2.bf16.msra.mxu0 0
        %645 = vmatprep.subr.bf16.mxu0 0
        %646 = vmatpush2.bf16.msra.mxu0 0
        %647 = vmatprep.mubr.bf16.mxu0 0
        %648 = vmatmul.mubr.bf16.gmra.mxu0 %v533
        %v649 = vpop.f32.mrf.mxu0
        %v650 = vadd.f32 %v610, %v649
        %v651 = vpop.f32.mrf.mxu0
        %v652 = vpop.f32.mrf.mxu0
        %v653 = vpop.f32.mrf.mxu0
        %654 = vdwg.mxu0
        %655 = vst [vmem:[%s209] sm:$0xff] %v650
        %v656 = vrot.slane %v650, 4
        %v657 = vadd.f32 %v650, %v656
        %v658 = vrot.slane %v657, 2
        %v659 = vadd.f32 %v657, %v658
        %v660 = vrot.slane %v659, 1
        %v661 = vadd.f32 %v659, %v660
        %v662 = vmul.f32 %v650, %v650
        %v663 = vrot.slane %v662, 4
        %v664 = vadd.f32 %v662, %v663
        %v665 = vrot.slane %v664, 2
        %v666 = vadd.f32 %v664, %v665
        %v667 = vrot.slane %v666, 1
        %v668 = vadd.f32 %v666, %v667
        %vm669 = vcmask 1040384
        %v670 = vsel %vm669, %v661, %v668
        %v671 = vld [vmem:[%s2] sm:$0xff]
        %v672 = vld [vmem:[%s2 + $0x8] sm:$0xff]
        %v673 = vld [vmem:[%s2 + $0x10] sm:$0xff]
        %v674 = vld [vmem:[%s2 + $0x18] sm:$0xff]
        %v675 = vld [vmem:[%s2 + $0x20] sm:$0xff]
        %v676 = vld [vmem:[%s2 + $0x28] sm:$0xff]
        %v677 = vld [vmem:[%s2 + $0x30] sm:$0xff]
        %v678 = vld [vmem:[%s2 + $0x38] sm:$0xff]
        %v679 = vld [vmem:[%s2 + $0x40] sm:$0xff]
        %v680 = vld [vmem:[%s2 + $0x48] sm:$0xff]
        %v681 = vld [vmem:[%s2 + $0x50] sm:$0xff]
        %v682 = vld [vmem:[%s2 + $0x58] sm:$0xff]
        %v683 = vld [vmem:[%s2 + $0x60] sm:$0xff]
        %v684 = vld [vmem:[%s2 + $0x68] sm:$0xff]
        %v685 = vld [vmem:[%s2 + $0x70] sm:$0xff]
        %v686 = vld [vmem:[%s2 + $0x78] sm:$0xff]
        %687 = vmatprep.subr.mxu0 0.0
        %688 = vmatpush1.msra.mxu0 %v686
        %689 = vmatprep.subr.mxu0 0.0
        %690 = vmatpush1.msra.mxu0 %v685
        %691 = vmatprep.subr.mxu0 0.0
        %692 = vmatpush1.msra.mxu0 %v684
        %693 = vmatprep.subr.mxu0 0.0
        %694 = vmatpush1.msra.mxu0 %v683
        %695 = vmatprep.subr.mxu0 0.0
        %696 = vmatpush1.msra.mxu0 %v682
        %697 = vmatprep.subr.mxu0 0.0
        %698 = vmatpush1.msra.mxu0 %v681
        %699 = vmatprep.subr.mxu0 0.0
        %700 = vmatpush1.msra.mxu0 %v680
        %701 = vmatprep.subr.mxu0 0.0
        %702 = vmatpush1.msra.mxu0 %v679
        %703 = vmatprep.subr.mxu0 0.0
        %704 = vmatpush1.msra.mxu0 %v678
        %705 = vmatprep.subr.mxu0 0.0
        %706 = vmatpush1.msra.mxu0 %v677
        %707 = vmatprep.subr.mxu0 0.0
        %708 = vmatpush1.msra.mxu0 %v676
        %709 = vmatprep.subr.mxu0 0.0
        %710 = vmatpush1.msra.mxu0 %v675
        %711 = vmatprep.subr.mxu0 0.0
        %712 = vmatpush1.msra.mxu0 %v674
        %713 = vmatprep.subr.mxu0 0.0
        %714 = vmatpush1.msra.mxu0 %v673
        %715 = vmatprep.subr.mxu0 0.0
        %716 = vmatpush1.msra.mxu0 %v672
        %717 = vmatprep.subr.mxu0 0.0
        %718 = vmatpush1.msra.mxu0 %v671
        %719 = vmatprep.subr.mxu0 0.0
        %720 = vmatpush2.msra.mxu0 0.0
        %721 = vmatprep.subr.mxu0 0.0
        %722 = vmatpush2.msra.mxu0 0.0
        %723 = vmatprep.subr.mxu0 0.0
        %724 = vmatpush2.msra.mxu0 0.0
        %725 = vmatprep.subr.mxu0 0.0
        %726 = vmatpush2.msra.mxu0 0.0
        %727 = vmatprep.subr.mxu0 0.0
        %728 = vmatpush2.msra.mxu0 0.0
        %729 = vmatprep.subr.mxu0 0.0
        %730 = vmatpush2.msra.mxu0 0.0
        %731 = vmatprep.subr.mxu0 0.0
        %732 = vmatpush2.msra.mxu0 0.0
        %733 = vmatprep.subr.mxu0 0.0
        %734 = vmatpush2.msra.mxu0 0.0
        %735 = vmatprep.subr.mxu0 0.0
        %736 = vmatpush2.msra.mxu0 0.0
        %737 = vmatprep.subr.mxu0 0.0
        %738 = vmatpush2.msra.mxu0 0.0
        %739 = vmatprep.subr.mxu0 0.0
        %740 = vmatpush2.msra.mxu0 0.0
        %741 = vmatprep.subr.mxu0 0.0
        %742 = vmatpush2.msra.mxu0 0.0
        %743 = vmatprep.subr.mxu0 0.0
        %744 = vmatpush2.msra.mxu0 0.0
        %745 = vmatprep.subr.mxu0 0.0
        %746 = vmatpush2.msra.mxu0 0.0
        %747 = vmatprep.subr.mxu0 0.0
        %748 = vmatpush2.msra.mxu0 0.0
        %749 = vmatprep.subr.mxu0 0.0
        %750 = vmatpush2.msra.mxu0 0.0
        %751 = vmatprep.mubr.f32.mxu0 0.0
        %752 = vmatmul.mubr.f32.gmra.mxu0 %v670
        %v753 = vpop.f32.mrf.mxu0
        %v754 = vadd.f32 0.0, %v753
        %v755 = vpop.f32.mrf.mxu0
        %756 = vdwg.mxu0
        %vm757 = vcmask 58368
        %758 = vst.msk [vmem:[%s216] sm:$0x3] %vm757, %v754
        %s759 = sand.u32 %s99, 1
        %s760 = scalar_lea.sflag [#allocation4], %s759
        %s761 = sand.u32 %s99, 1
        %s762 = smul.addr %s761, 8
        %s763 = scalar_lea.vmem [#allocation5], %s762
        %s764 = sand.u32 %s125, 1
        %s765 = scalar_lea.sflag [#allocation7], %s764
        %s766 = sand.u32 %s125, 1
        %s767 = smul.addr %s766, 2
        %s768 = scalar_lea.vmem [#allocation6], %s767
        // Predicated region
        $region37: #{tpu_custom_call.1} parent=31 // pred_check
          %p769 = pneg %p109
        $region38: #{tpu_custom_call.1} parent=31 // pred_check_branch
          %771 = sbr.rel (%p769) target = $region40
        $region39: #{tpu_custom_call.1} parent=31 // pred_region
          %s773 = ssub.s32 128, 128
          %774 = vsyncadd %s760, %s773
          %s775 = smul.addr %s23, 128
          %s776 = scalar_lea.hbm %s3, %s775
          %s778 = sshll.u32 %s763, 4
          %s779 = int_to_ptr.vmem [resolvable:$true] %s778
          %781 = dma.vmem_to_hbm [thread:$0]  %s779, 128, %s776, %s760
        $region40: #{tpu_custom_call.1} parent=31 // pred_fallthru
          _
        // Predicated region
        $region41: #{tpu_custom_call.1} parent=31 // pred_check
          %p782 = pneg %p135
        $region42: #{tpu_custom_call.1} parent=31 // pred_check_branch
          %784 = sbr.rel (%p782) target = $region44
        $region43: #{tpu_custom_call.1} parent=31 // pred_region
          %s786 = ssub.s32 32, 32
          %787 = vsyncadd %s765, %s786
          %s788 = smul.addr %s23, 32
          %s789 = scalar_lea.hbm %s4, %s788
          %s791 = sshll.u32 %s768, 4
          %s792 = int_to_ptr.vmem [resolvable:$true] %s791
          %794 = dma.vmem_to_hbm [thread:$0]  %s792, 32, %s789, %s765
        $region44: #{tpu_custom_call.1} parent=31 // pred_fallthru
          _
      $region32: #{tpu_custom_call.1} parent=5 // pred_fallthru
        _
      %p795 = scmp.le.s32.totalorder 2, %s18
      // Predicated region
      $region45: #{tpu_custom_call.1} parent=5 // pred_check
        %p796 = pneg %p795
      $region46: #{tpu_custom_call.1} parent=5 // pred_check_branch
        %798 = sbr.rel (%p796) target = $region48
      $region47: #{tpu_custom_call.1} parent=5 // pred_region
        %s799 = ssub.s32 %s18, 2
        // Predicated region
        $region49: #{tpu_custom_call.1} parent=47 // pred_check
          %p800 = pneg %p115
        $region50: #{tpu_custom_call.1} parent=47 // pred_check_branch
          %802 = sbr.rel (%p800) target = $region52
        $region51: #{tpu_custom_call.1} parent=47 // pred_region
          %s803 = sand.u32 %s100, 1
          %s804 = scalar_lea.sflag [#allocation4], %s803
          %s805 = sand.u32 %s100, 1
          %s806 = smul.addr %s805, 8
          %s807 = scalar_lea.vmem [#allocation5], %s806
          %808 = dma.done %s804, 128
        $region52: #{tpu_custom_call.1} parent=47 // pred_fallthru
          _
        // Predicated region
        $region53: #{tpu_custom_call.1} parent=47 // pred_check
          %p809 = pneg %p141
        $region54: #{tpu_custom_call.1} parent=47 // pred_check_branch
          %811 = sbr.rel (%p809) target = $region56
        $region55: #{tpu_custom_call.1} parent=47 // pred_region
          %s812 = sand.u32 %s126, 1
          %s813 = scalar_lea.sflag [#allocation7], %s812
          %s814 = sand.u32 %s126, 1
          %s815 = smul.addr %s814, 2
          %s816 = scalar_lea.vmem [#allocation6], %s815
          %817 = dma.done %s813, 32
        $region56: #{tpu_custom_call.1} parent=47 // pred_fallthru
          _
      $region48: #{tpu_custom_call.1} parent=5 // pred_fallthru
        _
    $region6: #{tpu_custom_call.1} parent=1 // loop_footer
      %s22 = sadd.s32 1, %s18
    $region7: #{tpu_custom_call.1} parent=1 // loop_footer_branch
      %17 = sbr.rel target = $region3
    $region8: #{tpu_custom_call.1} parent=1 // loop_exit
      _
    %818 = vsyncpa [#allocation3], 1
    %s819 = scalar_lea.sflag [#allocation3], 1
    %820 = vsyncpa %s819, 1
    %821 = vsyncpa [#allocation4], 1
    %s822 = scalar_lea.sflag [#allocation4], 1
    %823 = vsyncpa %s822, 1
    %824 = vsyncpa [#allocation7], 1
    %s825 = scalar_lea.sflag [#allocation7], 1
    %826 = vsyncpa %s825, 1

</llo_original>
